<compile_context>
chip_gen: v5e
topology: v5e:2x2
jax: 0.10.0
libtpu: 0.0.40
codegen_flags: <defaults>
</compile_context>

<pallas_src>
import functools

import jax
import jax.numpy as jnp
from jax.experimental import pallas as pl
from jax.experimental.pallas import tpu as pltpu

LANES = 128


def _dueling_q_kernel(x_ref, w1_ref, b1_ref, w2_ref, b2_ref, wh_ref, bh_ref,
                      q_ref, psum_ref, *, tile_b, batch):
    blk = pl.program_id(0)   # batch-tile index (data-parallel)

    # ---- feature layers + fused (V | A | zero-pad) head for this batch tile.
    # bf16 MXU operands, f32 accumulation; bias/ReLU stay f32 (v5e-friendly).
    h1 = jnp.dot(x_ref[...], w1_ref[...],
                 preferred_element_type=jnp.float32) + b1_ref[...]
    h1 = jnp.maximum(h1, 0.0).astype(jnp.bfloat16)
    h2 = jnp.dot(h1, w2_ref[...],
                 preferred_element_type=jnp.float32) + b2_ref[...]
    h2 = jnp.maximum(h2, 0.0).astype(jnp.bfloat16)
    heads = jnp.dot(h2, wh_ref[...],
                    preferred_element_type=jnp.float32) + bh_ref[...]
    # heads: (tile_b, 128) f32; lane 0 = V, lanes 1..A = advantages, lanes > A == 0

    # Un-meaned dueling combine: lane j in 1..A holds v + a_j.  Full-width,
    # lane-dense bf16 store; the wrapper slices lanes 1..A and subtracts the
    # finalized global advantage mean.
    v = heads[:, 0:1]
    q_ref[...] = (v + heads).astype(q_ref.dtype)

    # Per-tile advantage partial sum (exact: padded weight/bias lanes are
    # exactly zero, padded batch rows are masked out).  Stored on sublane 0
    # of this tile's (8, 128) block; remaining sublanes are zero so the
    # wrapper can simply jnp.sum() the whole thing.
    lane = jax.lax.broadcasted_iota(jnp.int32, heads.shape, 1)
    row = jax.lax.broadcasted_iota(jnp.int32, heads.shape, 0) + blk * tile_b
    adv = jnp.where((lane >= 1) & (row < batch), heads, 0.0)
    partial = jnp.sum(adv, axis=0, keepdims=True)                  # (1, 128)
    sub = jax.lax.broadcasted_iota(jnp.int32, psum_ref.shape, 0)
    psum_ref[...] = jnp.where(sub == 0, partial, 0.0)


def dueling_q_forward(x, params, *, tile_b=256):
    """Dueling-Q forward.  x: (B, state_size) f32.  Returns (B, action_size) f32."""
    w1, b1, w2, b2, wv, bv, wa, ba = params
    B, S = x.shape
    H1 = w1.shape[1]
    H2 = w2.shape[1]
    A = wa.shape[1]
    assert 1 + A <= LANES, "action_size must fit in one 128-lane tile"

    # Fuse the value and advantage heads into one lane-dense (H2, 128) matmul:
    # column 0 = V weights, columns 1..A = advantage weights, rest exactly zero.
    wh = jnp.zeros((H2, LANES), jnp.float32)
    wh = wh.at[:, 0:1].set(wv).at[:, 1:1 + A].set(wa)
    bh = jnp.zeros((1, LANES), jnp.float32)
    bh = bh.at[:, 0:1].set(bv).at[:, 1:1 + A].set(ba)

    # Batch tiling: multiples of 128 (MXU M-dim / lane-dense stores), capped
    # near B so tiny batches do not over-pad.
    tile_b = max(128, (tile_b // 128) * 128)
    tile_b = min(tile_b, ((B + 127) // 128) * 128)
    n_blk = pl.cdiv(B, tile_b)
    padded_b = n_blk * tile_b

    # Cast/pad x once, directly in bf16 (no extra f32 pass over x).
    x_bf = x.astype(jnp.bfloat16)
    if padded_b != B:
        x_bf = jnp.pad(x_bf, ((0, padded_b - B), (0, 0)))
    w1_bf = w1.astype(jnp.bfloat16)
    w2_bf = w2.astype(jnp.bfloat16)
    wh_bf = wh.astype(jnp.bfloat16)

    kernel = functools.partial(_dueling_q_kernel, tile_b=tile_b, batch=B)

    resident = lambda i: (0, 0)   # constant block index -> stays VMEM-resident
    grid_spec = pltpu.PrefetchScalarGridSpec(
        num_scalar_prefetch=0,
        grid=(n_blk,),                                    # single data-parallel axis
        in_specs=[
            pl.BlockSpec((tile_b, S), lambda i: (i, 0)),  # x tile (pipelined)
            pl.BlockSpec((S, H1), resident),              # w1
            pl.BlockSpec((1, H1), resident),              # b1
            pl.BlockSpec((H1, H2), resident),             # w2
            pl.BlockSpec((1, H2), resident),              # b2
            pl.BlockSpec((H2, LANES), resident),          # fused head W
            pl.BlockSpec((1, LANES), resident),           # fused head b
        ],
        out_specs=[
            pl.BlockSpec((tile_b, LANES), lambda i: (i, 0)),  # un-meaned (v + a)
            pl.BlockSpec((8, LANES), lambda i: (i, 0)),       # per-tile adv partial sum
        ],
    )

    out, psum = pl.pallas_call(
        kernel,
        out_shape=(
            jax.ShapeDtypeStruct((padded_b, LANES), jnp.bfloat16),
            jax.ShapeDtypeStruct((n_blk * 8, LANES), jnp.float32),
        ),
        grid_spec=grid_spec,
        compiler_params=pltpu.CompilerParams(
            # Every grid step is independent (per-tile outputs only), so the
            # batch axis can be sharded across v7x's two TensorCores.
            dimension_semantics=("parallel",),
        ),
    )(x_bf, w1_bf, b1, w2_bf, b2, wh_bf, bh)

    # Global mean over (batch, action); the subtract fuses into the slice copy.
    mean_a = jnp.sum(psum) * (1.0 / float(B * A))
    return out[:B, 1:1 + A].astype(jnp.float32) - mean_a


def init_params(key, state_size, action_size):
    """Matches PyTorch nn.Linear default init (U[-1/sqrt(fan_in), +1/sqrt(fan_in)]).
    Weights are stored transposed vs. PyTorch, i.e. (in_features, out_features)."""
    def linear(k, fan_in, fan_out):
        kw, kb = jax.random.split(k)
        bound = 1.0 / jnp.sqrt(fan_in)
        w = jax.random.uniform(kw, (fan_in, fan_out), jnp.float32, -bound, bound)
        b = jax.random.uniform(kb, (1, fan_out), jnp.float32, -bound, bound)
        return w, b

    k1, k2, k3, k4 = jax.random.split(key, 4)
    w1, b1 = linear(k1, state_size, 32)
    w2, b2 = linear(k2, 32, 16)
    wv, bv = linear(k3, 16, 1)
    wa, ba = linear(k4, 16, action_size)
    return (w1, b1, w2, b2, wv, bv, wa, ba)


def reference_forward(x, params):
    """Pure-JAX reference mirroring the kernel's bf16-operand / f32-accumulate math."""
    w1, b1, w2, b2, wv, bv, wa, ba = params
    bf = jnp.bfloat16
    h1 = jnp.maximum(jnp.dot(x.astype(bf), w1.astype(bf),
                             preferred_element_type=jnp.float32) + b1, 0.0)
    h2 = jnp.maximum(jnp.dot(h1.astype(bf), w2.astype(bf),
                             preferred_element_type=jnp.float32) + b2, 0.0)
    a = jnp.dot(h2.astype(bf), wa.astype(bf),
                preferred_element_type=jnp.float32) + ba
    v = jnp.dot(h2.astype(bf), wv.astype(bf),
                preferred_element_type=jnp.float32) + bv
    return v + (a - jnp.mean(a))   # GLOBAL mean, exactly as in the PyTorch module


if __name__ == "__main__":
    state_size = 16
    action_size = 4
    batch = 300                     # 3 x 128-row tiles, ragged last tile

    key = jax.random.PRNGKey(0)
    k_params, k_x = jax.random.split(key)
    params = init_params(k_params, state_size, action_size)
    x = jax.random.normal(k_x, (batch, state_size), jnp.float32)

    q = jax.block_until_ready(dueling_q_forward(x, params, tile_b=128))

    q_ref = reference_forward(x, params)
    assert q.shape == (batch, action_size)
    max_err = float(jnp.max(jnp.abs(q - q_ref)))
    assert jnp.allclose(q, q_ref, atol=5e-3, rtol=5e-3), \
        f"mismatch vs JAX reference, max abs err = {max_err}"
    print("KERNEL_OK")
</pallas_src>

<mosaic_0001>
module attributes {stable_mosaic.version = 11 : i64} {
  func.func @_dueling_q_kernel(%arg0: i32, %arg1: memref<128x16xbf16, #tpu.memory_space<vmem>>, %arg2: memref<16x32xbf16, #tpu.memory_space<vmem>>, %arg3: memref<1x32xf32, #tpu.memory_space<vmem>>, %arg4: memref<32x16xbf16, #tpu.memory_space<vmem>>, %arg5: memref<1x16xf32, #tpu.memory_space<vmem>>, %arg6: memref<16x128xbf16, #tpu.memory_space<vmem>>, %arg7: memref<1x128xf32, #tpu.memory_space<vmem>>, %arg8: memref<128x128xbf16, #tpu.memory_space<vmem>>, %arg9: memref<8x128xf32, #tpu.memory_space<vmem>>) attributes {dimension_semantics = [#tpu.dimension_semantics<parallel>], iteration_bounds = array<i64: 3>, scalar_prefetch = 0 : i64, scratch_operands = 0 : i64, tpu.core_type = #tpu.core_type<tc>, window_params = [{transform_indices = @transform_0, window_bounds = array<i64: 128, 16>}, {pipeline_mode = #tpu.pipeline_mode<synchronous>, transform_indices = @transform_1, window_bounds = array<i64: 16, 32>}, {pipeline_mode = #tpu.pipeline_mode<synchronous>, transform_indices = @transform_2, window_bounds = array<i64: 1, 32>}, {pipeline_mode = #tpu.pipeline_mode<synchronous>, transform_indices = @transform_3, window_bounds = array<i64: 32, 16>}, {pipeline_mode = #tpu.pipeline_mode<synchronous>, transform_indices = @transform_4, window_bounds = array<i64: 1, 16>}, {pipeline_mode = #tpu.pipeline_mode<synchronous>, transform_indices = @transform_5, window_bounds = array<i64: 16, 128>}, {pipeline_mode = #tpu.pipeline_mode<synchronous>, transform_indices = @transform_6, window_bounds = array<i64: 1, 128>}, {transform_indices = @transform_7, window_bounds = array<i64: 128, 128>}, {transform_indices = @transform_8, window_bounds = array<i64: 8, 128>}]} {
    %c0 = arith.constant 0 : index
    %c0_0 = arith.constant 0 : index
    %0 = vector.load %arg1[%c0, %c0_0] : memref<128x16xbf16, #tpu.memory_space<vmem>>, vector<128x16xbf16>
    %c0_1 = arith.constant 0 : index
    %c0_2 = arith.constant 0 : index
    %1 = vector.load %arg2[%c0_1, %c0_2] : memref<16x32xbf16, #tpu.memory_space<vmem>>, vector<16x32xbf16>
    %cst = arith.constant dense<0.000000e+00> : vector<128x32xf32>
    %2 = tpu.matmul %0, %1, %cst {dimension_numbers = #tpu.dot_dimension_numbers<[1], [0], [0], [1], [0, 0, 1, 1], [], []>} : vector<128x16xbf16>, vector<16x32xbf16>, vector<128x32xf32> -> vector<128x32xf32>
    %c0_3 = arith.constant 0 : index
    %c0_4 = arith.constant 0 : index
    %3 = vector.load %arg3[%c0_3, %c0_4] : memref<1x32xf32, #tpu.memory_space<vmem>>, vector<1x32xf32>
    %4 = vector.broadcast %3 : vector<1x32xf32> to vector<128x32xf32>
    %5 = arith.addf %2, %4 : vector<128x32xf32>
    %cst_5 = arith.constant 0.000000e+00 : f32
    %6 = vector.broadcast %cst_5 : f32 to vector<128x32xf32>
    %7 = arith.maximumf %5, %6 : vector<128x32xf32>
    %8 = arith.truncf %7 : vector<128x32xf32> to vector<128x32xbf16>
    %c0_6 = arith.constant 0 : index
    %c0_7 = arith.constant 0 : index
    %9 = vector.load %arg4[%c0_6, %c0_7] : memref<32x16xbf16, #tpu.memory_space<vmem>>, vector<32x16xbf16>
    %cst_8 = arith.constant dense<0.000000e+00> : vector<128x16xf32>
    %10 = tpu.matmul %8, %9, %cst_8 {dimension_numbers = #tpu.dot_dimension_numbers<[1], [0], [0], [1], [0, 0, 1, 1], [], []>} : vector<128x32xbf16>, vector<32x16xbf16>, vector<128x16xf32> -> vector<128x16xf32>
    %c0_9 = arith.constant 0 : index
    %c0_10 = arith.constant 0 : index
    %11 = vector.load %arg5[%c0_9, %c0_10] : memref<1x16xf32, #tpu.memory_space<vmem>>, vector<1x16xf32>
    %12 = vector.broadcast %11 : vector<1x16xf32> to vector<128x16xf32>
    %13 = arith.addf %10, %12 : vector<128x16xf32>
    %cst_11 = arith.constant 0.000000e+00 : f32
    %14 = vector.broadcast %cst_11 : f32 to vector<128x16xf32>
    %15 = arith.maximumf %13, %14 : vector<128x16xf32>
    %16 = arith.truncf %15 : vector<128x16xf32> to vector<128x16xbf16>
    %c0_12 = arith.constant 0 : index
    %c0_13 = arith.constant 0 : index
    %17 = vector.load %arg6[%c0_12, %c0_13] : memref<16x128xbf16, #tpu.memory_space<vmem>>, vector<16x128xbf16>
    %cst_14 = arith.constant dense<0.000000e+00> : vector<128x128xf32>
    %18 = tpu.matmul %16, %17, %cst_14 {dimension_numbers = #tpu.dot_dimension_numbers<[1], [0], [0], [1], [0, 0, 1, 1], [], []>} : vector<128x16xbf16>, vector<16x128xbf16>, vector<128x128xf32> -> vector<128x128xf32>
    %c0_15 = arith.constant 0 : index
    %c0_16 = arith.constant 0 : index
    %19 = vector.load %arg7[%c0_15, %c0_16] : memref<1x128xf32, #tpu.memory_space<vmem>>, vector<1x128xf32>
    %20 = vector.broadcast %19 : vector<1x128xf32> to vector<128x128xf32>
    %21 = arith.addf %18, %20 : vector<128x128xf32>
    %22 = vector.extract_strided_slice %21 {offsets = [0, 0], sizes = [128, 1], strides = [1, 1]} : vector<128x128xf32> to vector<128x1xf32>
    %23 = vector.broadcast %22 : vector<128x1xf32> to vector<128x128xf32>
    %24 = arith.addf %23, %21 : vector<128x128xf32>
    %25 = arith.truncf %24 : vector<128x128xf32> to vector<128x128xbf16>
    %c0_17 = arith.constant 0 : index
    %c0_18 = arith.constant 0 : index
    %26 = vector.load %arg8[%c0_17, %c0_18] : memref<128x128xbf16, #tpu.memory_space<vmem>>, vector<128x128xbf16>
    tpu.vector_store %arg8[%c0_17, %c0_18], %25 {strides = array<i32>} : memref<128x128xbf16, #tpu.memory_space<vmem>>, vector<128x128xbf16>,
    %27 = tpu.iota {dimensions = array<i32: 1>} : vector<128x128xi32>
    %28 = tpu.iota {dimensions = array<i32: 0>} : vector<128x128xi32>
    %c128_i32 = arith.constant 128 : i32
    %29 = arith.muli %arg0, %c128_i32 : i32
    %30 = vector.broadcast %29 : i32 to vector<128x128xi32>
    %31 = arith.addi %28, %30 : vector<128x128xi32>
    %c1_i32 = arith.constant 1 : i32
    %32 = vector.broadcast %c1_i32 : i32 to vector<128x128xi32>
    %33 = arith.cmpi sge, %27, %32 : vector<128x128xi32>
    %c300_i32 = arith.constant 300 : i32
    %34 = vector.broadcast %c300_i32 : i32 to vector<128x128xi32>
    %35 = arith.cmpi slt, %31, %34 : vector<128x128xi32>
    %36 = arith.andi %33, %35 : vector<128x128xi1>
    %cst_19 = arith.constant 0.000000e+00 : f32
    %37 = vector.broadcast %cst_19 : f32 to vector<128x128xf32>
    %38 = arith.select %36, %21, %37 : vector<128x128xi1>, vector<128x128xf32>
    %cst_20 = arith.constant dense<0.000000e+00> : vector<128xf32>
    %39 = vector.multi_reduction <add>, %38, %cst_20 [0] : vector<128x128xf32> to vector<128xf32>
    %40 = vector.shape_cast %39 : vector<128xf32> to vector<1x128xf32>
    %41 = tpu.iota {dimensions = array<i32: 0>} : vector<8x128xi32>
    %c0_i32 = arith.constant 0 : i32
    %42 = vector.broadcast %c0_i32 : i32 to vector<8x128xi32>
    %43 = arith.cmpi eq, %41, %42 : vector<8x128xi32>
    %cst_21 = arith.constant 0.000000e+00 : f32
    %44 = vector.shape_cast %40 : vector<1x128xf32> to vector<1x128xf32>
    %45 = vector.broadcast %44 : vector<1x128xf32> to vector<8x128xf32>
    %46 = vector.broadcast %cst_21 : f32 to vector<8x128xf32>
    %47 = arith.select %43, %45, %46 : vector<8x128xi1>, vector<8x128xf32>
    %c0_22 = arith.constant 0 : index
    %c0_23 = arith.constant 0 : index
    %48 = vector.load %arg9[%c0_22, %c0_23] : memref<8x128xf32, #tpu.memory_space<vmem>>, vector<8x128xf32>
    tpu.vector_store %arg9[%c0_22, %c0_23], %47 {strides = array<i32>} : memref<8x128xf32, #tpu.memory_space<vmem>>, vector<8x128xf32>,
    return
  }
  func.func @transform_0(%arg0: i32) -> (i32, i32) {
    %c0_i32 = arith.constant 0 : i32
    %c0_i32_0 = arith.constant 0 : i32
    return %arg0, %c0_i32 : i32, i32
  }
  func.func @transform_1(%arg0: i32) -> (i32, i32) {
    %c0_i32 = arith.constant 0 : i32
    %c0_i32_0 = arith.constant 0 : i32
    %c0_i32_1 = arith.constant 0 : i32
    return %c0_i32, %c0_i32_0 : i32, i32
  }
  func.func @transform_2(%arg0: i32) -> (i32, i32) {
    %c0_i32 = arith.constant 0 : i32
    %c0_i32_0 = arith.constant 0 : i32
    %c0_i32_1 = arith.constant 0 : i32
    return %c0_i32, %c0_i32_0 : i32, i32
  }
  func.func @transform_3(%arg0: i32) -> (i32, i32) {
    %c0_i32 = arith.constant 0 : i32
    %c0_i32_0 = arith.constant 0 : i32
    %c0_i32_1 = arith.constant 0 : i32
    return %c0_i32, %c0_i32_0 : i32, i32
  }
  func.func @transform_4(%arg0: i32) -> (i32, i32) {
    %c0_i32 = arith.constant 0 : i32
    %c0_i32_0 = arith.constant 0 : i32
    %c0_i32_1 = arith.constant 0 : i32
    return %c0_i32, %c0_i32_0 : i32, i32
  }
  func.func @transform_5(%arg0: i32) -> (i32, i32) {
    %c0_i32 = arith.constant 0 : i32
    %c0_i32_0 = arith.constant 0 : i32
    %c0_i32_1 = arith.constant 0 : i32
    return %c0_i32, %c0_i32_0 : i32, i32
  }
  func.func @transform_6(%arg0: i32) -> (i32, i32) {
    %c0_i32 = arith.constant 0 : i32
    %c0_i32_0 = arith.constant 0 : i32
    %c0_i32_1 = arith.constant 0 : i32
    return %c0_i32, %c0_i32_0 : i32, i32
  }
  func.func @transform_7(%arg0: i32) -> (i32, i32) {
    %c0_i32 = arith.constant 0 : i32
    %c0_i32_0 = arith.constant 0 : i32
    return %arg0, %c0_i32 : i32, i32
  }
  func.func @transform_8(%arg0: i32) -> (i32, i32) {
    %c0_i32 = arith.constant 0 : i32
    %c0_i32_0 = arith.constant 0 : i32
    return %arg0, %c0_i32 : i32, i32
  }
}

</mosaic_0001>

<llo_original>
// kernel: tpu_custom_call.1
$region0: #{tpu_custom_call.1}
  #allocation0 [shape = 'u32[]', space=smem, size = 0x4, offset = 0x4, fixed_abs, tag = 'smem constant byte address 0x4 - core index']
  #allocation1 [shape = 'u32[72,128]{1,0:T(1,128)}', space=vmem, size = 0x9000, scoped, tag = 'internal scratch']
  %s0 = inlined_call_operand.vmem [shape: bf16[384,16], index: 0, kind: input, shape index: {}]
  %s1 = inlined_call_operand.vmem [shape: bf16[16,32], index: 1, kind: input, shape index: {}]
  %s2 = inlined_call_operand.vmem [shape: f32[1,32], index: 2, kind: input, shape index: {}]
  %s3 = inlined_call_operand.vmem [shape: bf16[32,16], index: 3, kind: input, shape index: {}]
  %s4 = inlined_call_operand.vmem [shape: f32[1,16], index: 4, kind: input, shape index: {}]
  %s5 = inlined_call_operand.vmem [shape: bf16[16,128], index: 5, kind: input, shape index: {}]
  %s6 = inlined_call_operand.vmem [shape: f32[1,128], index: 6, kind: input, shape index: {}]
  %s7 = inlined_call_operand.hbm [shape: bf16[384,128], index: 7, kind: output, shape index: {0}]
  %s8 = inlined_call_operand.hbm [shape: f32[24,128], index: 8, kind: output, shape index: {1}]
  %9 = xla_tuple %s7, %s8
  %s10 = sld [smem:[#allocation0]]
  $region69: #{tpu_custom_call.1} parent=0
    _
  %s12 = ssub.s32 1, %s10
  %s13 = scalar_select 0, %s12, %s10
  $region1: #{tpu_custom_call.1} parent=0
    #allocation2 [shape = 'u8[65536]{0}', space=vmem, size = 0x10000, scoped, tag = 'output window, operand 0']
    #allocation3 [shape = 's32[2]{0}', space=sflag, size = 0x8, scoped, tag = 'scoped memory for tpu_custom_call.1']
    #allocation4 [shape = 'u8[8192]{0}', space=vmem, size = 0x2000, scoped, tag = 'output window, operand 1']
    #allocation5 [shape = 's32[2]{0}', space=sflag, size = 0x8, scoped, tag = 'scoped memory for tpu_custom_call.1']
    %14 = vsyncpa [#allocation3], 0
    %s15 = scalar_lea.sflag [#allocation3], 1
    %16 = vsyncpa %s15, 0
    %17 = vsyncpa [#allocation5], 0
    %s18 = scalar_lea.sflag [#allocation5], 1
    %19 = vsyncpa %s18, 0
    loop: start=0, step=1, limit=5
    $region2: #{tpu_custom_call.1} parent=1 // loop_pre_header
      _
    $region3: #{tpu_custom_call.1} parent=1 // loop_header
      %s21 = sphi 0, %s25
      %p22 = scmp.ge.s32.totalorder %s21, 5
      %s31 = sphi 0, %s33
      %s34 = sphi 0, %s31
      %s35 = sphi 0, %s34
      %s51 = sphi 0, %s35
      %s55 = sphi 0, %s55
      %s57 = sphi 0, %s55
      %s58 = sphi 0, %s57
      %s72 = sphi 0, %s58
      %s76 = sphi 0, %s76
      %s78 = sphi 0, %s76
      %s79 = sphi 0, %s78
      %s93 = sphi 0, %s79
      %s97 = sphi 0, %s97
      %s99 = sphi 0, %s97
      %s100 = sphi 0, %s99
      %s114 = sphi 0, %s100
      %s118 = sphi 0, %s118
      %s120 = sphi 0, %s118
      %s121 = sphi 0, %s120
      %s135 = sphi 0, %s121
      %s139 = sphi 0, %s139
      %s141 = sphi 0, %s139
      %s142 = sphi 0, %s141
      %s156 = sphi 0, %s142
      %s160 = sphi 0, %s160
      %s162 = sphi 0, %s160
      %s163 = sphi 0, %s162
      %s177 = sphi 0, %s163
      %s183 = sphi 0, %s185
      %s186 = sphi 0, %s183
      %s187 = sphi 0, %s186
      %s203 = sphi 0, %s187
      %s209 = sphi 0, %s211
      %s212 = sphi 0, %s209
      %s213 = sphi 0, %s212
      %s229 = sphi 0, %s213
    $region4: #{tpu_custom_call.1} parent=1 // loop_header_branch
      %24 = sbr.rel (%p22) target = $region8
    $region5: #{tpu_custom_call.1} parent=1 // loop_body
      %s26 = ssub.s32 %s21, 1
      %s27 = ssub.s32 %s21, 2
      %s28 = sadd.s32 %s21, 1
      %s29 = ssub.s32 %s21, %s28
      %p30 = scmp.eq.s32.totalorder %s29, 0
      %s32 = sadd.s32 %s31, 1
      %s33 = scalar_select %p30, %s31, %s32
      %p36 = pneg %p30
      %p37 = scmp.eq.s32.totalorder %s21, 2
      %p38 = por %p36, %p37
      %p39 = scmp.ne.s32.totalorder %s31, %s34
      %p40 = scmp.eq.s32.totalorder %s21, 0
      %p41 = por %p39, %p40
      %p42 = scmp.ne.s32.totalorder %s31, %s34
      %p43 = scmp.eq.s32.totalorder %s26, 2
      %p44 = por %p42, %p43
      %p45 = scmp.ne.s32.totalorder %s34, %s35
      %p46 = scmp.eq.s32.totalorder %s26, 0
      %p47 = por %p45, %p46
      %p48 = scmp.ne.s32.totalorder %s34, %s35
      %p49 = scmp.eq.s32.totalorder %s27, 2
      %p50 = por %p48, %p49
      %p52 = scmp.ne.s32.totalorder %s35, %s51
      %p53 = scmp.eq.s32.totalorder %s27, 0
      %p54 = por %p52, %p53
      %s56 = sadd.s32 %s55, 1
      %p59 = scmp.eq.s32.totalorder %s21, 2
      %p60 = scmp.ne.s32.totalorder %s55, %s57
      %p61 = scmp.eq.s32.totalorder %s21, 0
      %p62 = por %p60, %p61
      %p63 = scmp.ne.s32.totalorder %s55, %s57
      %p64 = scmp.eq.s32.totalorder %s26, 2
      %p65 = por %p63, %p64
      %p66 = scmp.ne.s32.totalorder %s57, %s58
      %p67 = scmp.eq.s32.totalorder %s26, 0
      %p68 = por %p66, %p67
      %p69 = scmp.ne.s32.totalorder %s57, %s58
      %p70 = scmp.eq.s32.totalorder %s27, 2
      %p71 = por %p69, %p70
      %p73 = scmp.ne.s32.totalorder %s58, %s72
      %p74 = scmp.eq.s32.totalorder %s27, 0
      %p75 = por %p73, %p74
      %s77 = sadd.s32 %s76, 1
      %p80 = scmp.eq.s32.totalorder %s21, 2
      %p81 = scmp.ne.s32.totalorder %s76, %s78
      %p82 = scmp.eq.s32.totalorder %s21, 0
      %p83 = por %p81, %p82
      %p84 = scmp.ne.s32.totalorder %s76, %s78
      %p85 = scmp.eq.s32.totalorder %s26, 2
      %p86 = por %p84, %p85
      %p87 = scmp.ne.s32.totalorder %s78, %s79
      %p88 = scmp.eq.s32.totalorder %s26, 0
      %p89 = por %p87, %p88
      %p90 = scmp.ne.s32.totalorder %s78, %s79
      %p91 = scmp.eq.s32.totalorder %s27, 2
      %p92 = por %p90, %p91
      %p94 = scmp.ne.s32.totalorder %s79, %s93
      %p95 = scmp.eq.s32.totalorder %s27, 0
      %p96 = por %p94, %p95
      %s98 = sadd.s32 %s97, 1
      %p101 = scmp.eq.s32.totalorder %s21, 2
      %p102 = scmp.ne.s32.totalorder %s97, %s99
      %p103 = scmp.eq.s32.totalorder %s21, 0
      %p104 = por %p102, %p103
      %p105 = scmp.ne.s32.totalorder %s97, %s99
      %p106 = scmp.eq.s32.totalorder %s26, 2
      %p107 = por %p105, %p106
      %p108 = scmp.ne.s32.totalorder %s99, %s100
      %p109 = scmp.eq.s32.totalorder %s26, 0
      %p110 = por %p108, %p109
      %p111 = scmp.ne.s32.totalorder %s99, %s100
      %p112 = scmp.eq.s32.totalorder %s27, 2
      %p113 = por %p111, %p112
      %p115 = scmp.ne.s32.totalorder %s100, %s114
      %p116 = scmp.eq.s32.totalorder %s27, 0
      %p117 = por %p115, %p116
      %s119 = sadd.s32 %s118, 1
      %p122 = scmp.eq.s32.totalorder %s21, 2
      %p123 = scmp.ne.s32.totalorder %s118, %s120
      %p124 = scmp.eq.s32.totalorder %s21, 0
      %p125 = por %p123, %p124
      %p126 = scmp.ne.s32.totalorder %s118, %s120
      %p127 = scmp.eq.s32.totalorder %s26, 2
      %p128 = por %p126, %p127
      %p129 = scmp.ne.s32.totalorder %s120, %s121
      %p130 = scmp.eq.s32.totalorder %s26, 0
      %p131 = por %p129, %p130
      %p132 = scmp.ne.s32.totalorder %s120, %s121
      %p133 = scmp.eq.s32.totalorder %s27, 2
      %p134 = por %p132, %p133
      %p136 = scmp.ne.s32.totalorder %s121, %s135
      %p137 = scmp.eq.s32.totalorder %s27, 0
      %p138 = por %p136, %p137
      %s140 = sadd.s32 %s139, 1
      %p143 = scmp.eq.s32.totalorder %s21, 2
      %p144 = scmp.ne.s32.totalorder %s139, %s141
      %p145 = scmp.eq.s32.totalorder %s21, 0
      %p146 = por %p144, %p145
      %p147 = scmp.ne.s32.totalorder %s139, %s141
      %p148 = scmp.eq.s32.totalorder %s26, 2
      %p149 = por %p147, %p148
      %p150 = scmp.ne.s32.totalorder %s141, %s142
      %p151 = scmp.eq.s32.totalorder %s26, 0
      %p152 = por %p150, %p151
      %p153 = scmp.ne.s32.totalorder %s141, %s142
      %p154 = scmp.eq.s32.totalorder %s27, 2
      %p155 = por %p153, %p154
      %p157 = scmp.ne.s32.totalorder %s142, %s156
      %p158 = scmp.eq.s32.totalorder %s27, 0
      %p159 = por %p157, %p158
      %s161 = sadd.s32 %s160, 1
      %p164 = scmp.eq.s32.totalorder %s21, 2
      %p165 = scmp.ne.s32.totalorder %s160, %s162
      %p166 = scmp.eq.s32.totalorder %s21, 0
      %p167 = por %p165, %p166
      %p168 = scmp.ne.s32.totalorder %s160, %s162
      %p169 = scmp.eq.s32.totalorder %s26, 2
      %p170 = por %p168, %p169
      %p171 = scmp.ne.s32.totalorder %s162, %s163
      %p172 = scmp.eq.s32.totalorder %s26, 0
      %p173 = por %p171, %p172
      %p174 = scmp.ne.s32.totalorder %s162, %s163
      %p175 = scmp.eq.s32.totalorder %s27, 2
      %p176 = por %p174, %p175
      %p178 = scmp.ne.s32.totalorder %s163, %s177
      %p179 = scmp.eq.s32.totalorder %s27, 0
      %p180 = por %p178, %p179
      %s181 = ssub.s32 %s21, %s28
      %p182 = scmp.eq.s32.totalorder %s181, 0
      %s184 = sadd.s32 %s183, 1
      %s185 = scalar_select %p182, %s183, %s184
      %p188 = pneg %p182
      %p189 = scmp.eq.s32.totalorder %s21, 2
      %p190 = por %p188, %p189
      %p191 = scmp.ne.s32.totalorder %s183, %s186
      %p192 = scmp.eq.s32.totalorder %s21, 0
      %p193 = por %p191, %p192
      %p194 = scmp.ne.s32.totalorder %s183, %s186
      %p195 = scmp.eq.s32.totalorder %s26, 2
      %p196 = por %p194, %p195
      %p197 = scmp.ne.s32.totalorder %s186, %s187
      %p198 = scmp.eq.s32.totalorder %s26, 0
      %p199 = por %p197, %p198
      %p200 = scmp.ne.s32.totalorder %s186, %s187
      %p201 = scmp.eq.s32.totalorder %s27, 2
      %p202 = por %p200, %p201
      %p204 = scmp.ne.s32.totalorder %s187, %s203
      %p205 = scmp.eq.s32.totalorder %s27, 0
      %p206 = por %p204, %p205
      %s207 = ssub.s32 %s21, %s28
      %p208 = scmp.eq.s32.totalorder %s207, 0
      %s210 = sadd.s32 %s209, 1
      %s211 = scalar_select %p208, %s209, %s210
      %p214 = pneg %p208
      %p215 = scmp.eq.s32.totalorder %s21, 2
      %p216 = por %p214, %p215
      %p217 = scmp.ne.s32.totalorder %s209, %s212
      %p218 = scmp.eq.s32.totalorder %s21, 0
      %p219 = por %p217, %p218
      %p220 = scmp.ne.s32.totalorder %s209, %s212
      %p221 = scmp.eq.s32.totalorder %s26, 2
      %p222 = por %p220, %p221
      %p223 = scmp.ne.s32.totalorder %s212, %s213
      %p224 = scmp.eq.s32.totalorder %s26, 0
      %p225 = por %p223, %p224
      %p226 = scmp.ne.s32.totalorder %s212, %s213
      %p227 = scmp.eq.s32.totalorder %s27, 2
      %p228 = por %p226, %p227
      %p230 = scmp.ne.s32.totalorder %s213, %s229
      %p231 = scmp.eq.s32.totalorder %s27, 0
      %p232 = por %p230, %p231
      %p233 = scmp.le.s32.totalorder 1, %s21
      %p234 = scmp.lt.s32.totalorder %s21, 4
      %p235 = pnand %p233, %p234
      %p236 = pneg %p235
      // Predicated region
      $region9: #{tpu_custom_call.1} parent=5 // pred_check
        _
      $region10: #{tpu_custom_call.1} parent=5 // pred_check_branch
        %238 = sbr.rel (%p235) target = $region12
      $region11: #{tpu_custom_call.1} parent=5 // pred_region
        %s239 = ssub.s32 %s21, 1
        // Predicated region
        $region13: #{tpu_custom_call.1} parent=11 // pred_check
          %p240 = pneg %p68
        $region14: #{tpu_custom_call.1} parent=11 // pred_check_branch
          %242 = sbr.rel (%p240) target = $region16
        $region15: #{tpu_custom_call.1} parent=11 // pred_region
          _
        $region16: #{tpu_custom_call.1} parent=11 // pred_fallthru
          _
        // Predicated region
        $region17: #{tpu_custom_call.1} parent=11 // pred_check
          %p243 = pneg %p89
        $region18: #{tpu_custom_call.1} parent=11 // pred_check_branch
          %245 = sbr.rel (%p243) target = $region20
        $region19: #{tpu_custom_call.1} parent=11 // pred_region
          _
        $region20: #{tpu_custom_call.1} parent=11 // pred_fallthru
          _
        // Predicated region
        $region21: #{tpu_custom_call.1} parent=11 // pred_check
          %p246 = pneg %p110
        $region22: #{tpu_custom_call.1} parent=11 // pred_check_branch
          %248 = sbr.rel (%p246) target = $region24
        $region23: #{tpu_custom_call.1} parent=11 // pred_region
          _
        $region24: #{tpu_custom_call.1} parent=11 // pred_fallthru
          _
        // Predicated region
        $region25: #{tpu_custom_call.1} parent=11 // pred_check
          %p249 = pneg %p131
        $region26: #{tpu_custom_call.1} parent=11 // pred_check_branch
          %251 = sbr.rel (%p249) target = $region28
        $region27: #{tpu_custom_call.1} parent=11 // pred_region
          _
        $region28: #{tpu_custom_call.1} parent=11 // pred_fallthru
          _
        // Predicated region
        $region29: #{tpu_custom_call.1} parent=11 // pred_check
          %p252 = pneg %p152
        $region30: #{tpu_custom_call.1} parent=11 // pred_check_branch
          %254 = sbr.rel (%p252) target = $region32
        $region31: #{tpu_custom_call.1} parent=11 // pred_region
          _
        $region32: #{tpu_custom_call.1} parent=11 // pred_fallthru
          _
        // Predicated region
        $region33: #{tpu_custom_call.1} parent=11 // pred_check
          %p255 = pneg %p173
        $region34: #{tpu_custom_call.1} parent=11 // pred_check_branch
          %257 = sbr.rel (%p255) target = $region36
        $region35: #{tpu_custom_call.1} parent=11 // pred_region
          _
        $region36: #{tpu_custom_call.1} parent=11 // pred_fallthru
          _
      $region12: #{tpu_custom_call.1} parent=5 // pred_fallthru
        _
      %p258 = scmp.lt.s32.totalorder %s21, 3
      // Predicated region
      $region37: #{tpu_custom_call.1} parent=5 // pred_check
        %p259 = pneg %p258
      $region38: #{tpu_custom_call.1} parent=5 // pred_check_branch
        %261 = sbr.rel (%p259) target = $region40
      $region39: #{tpu_custom_call.1} parent=5 // pred_region
        // Predicated region
        $region41: #{tpu_custom_call.1} parent=39 // pred_check
          %p262 = pneg %p41
        $region42: #{tpu_custom_call.1} parent=39 // pred_check_branch
          %264 = sbr.rel (%p262) target = $region44
        $region43: #{tpu_custom_call.1} parent=39 // pred_region
          %s265 = smul.u32 16, %s21
          %p266 = scmp.lt.s32.totalorder %s265, 47
          %s267 = scalar_select %p266, %s265, 47
          %s268 = smul.addr %s267, 4
          %s269 = scalar_lea.vmem %s0, %s268
          %s270 = smul.u32 16, %s21
        $region44: #{tpu_custom_call.1} parent=39 // pred_fallthru
          _
      $region40: #{tpu_custom_call.1} parent=5 // pred_fallthru
        _
      %p271 = scmp.le.s32.totalorder 1, %s21
      %p272 = scmp.lt.s32.totalorder %s21, 4
      %p273 = pnand %p271, %p272
      %p274 = pneg %p273
      // Predicated region
      $region45: #{tpu_custom_call.1} parent=5 // pred_check
        _
      $region46: #{tpu_custom_call.1} parent=5 // pred_check_branch
        %276 = sbr.rel (%p273) target = $region48
      $region47: #{tpu_custom_call.1} parent=5 // pred_region
        %s277 = ssub.s32 %s21, 1
        %s278 = smul.u32 16, %s26
        %p279 = scmp.lt.s32.totalorder %s278, 47
        %s280 = scalar_select %p279, %s278, 47
        %s281 = smul.addr %s280, 4
        %s282 = scalar_lea.vmem %s0, %s281
        %p283 = pneg %p47
        %p284 = pneg %p44
        %p285 = pneg %p68
        %p286 = pneg %p65
        %p287 = pneg %p89
        %p288 = pneg %p86
        %p289 = pneg %p110
        %p290 = pneg %p107
        %p291 = pneg %p131
        %p292 = pneg %p128
        %p293 = pneg %p152
        %p294 = pneg %p149
        %p295 = pneg %p173
        %p296 = pneg %p170
        %p297 = pneg %p199
        %p298 = pneg %p196
        %s299 = sand.u32 %s186, 1
        %s300 = scalar_lea.sflag [#allocation3], %s299
        %s301 = sand.u32 %s186, 1
        %s302 = smul.addr %s301, 64
        %s303 = scalar_lea.vmem [#allocation2], %s302
        %p304 = pneg %p225
        %p305 = pneg %p222
        %s306 = sand.u32 %s212, 1
        %s307 = scalar_lea.sflag [#allocation5], %s306
        %s308 = sand.u32 %s212, 1
        %s309 = smul.addr %s308, 8
        %s310 = scalar_lea.vmem [#allocation4], %s309
        %s311 = smul.u32 16, %s26
        %p312 = scmp.lt.s32.totalorder %s311, 47
        %s313 = scalar_select %p312, %s311, 47
        %s314 = smul.addr %s313, 4
        %s315 = scalar_lea.vmem %s0, %s314
        %s316 = smul.u32 16, %s26
        %s317 = smul.u32 16, %s26
        %v319 = vld [vmem:[%s315] sm:$0xf]
        %v320 = vld [vmem:[%s315 + $0x4] sm:$0xf]
        %v321 = vld [vmem:[%s315 + $0x8] sm:$0xf]
        %v322 = vld [vmem:[%s315 + $0xc] sm:$0xf]
        %v323 = vld [vmem:[%s315 + $0x10] sm:$0xf]
        %v324 = vld [vmem:[%s315 + $0x14] sm:$0xf]
        %v325 = vld [vmem:[%s315 + $0x18] sm:$0xf]
        %v326 = vld [vmem:[%s315 + $0x1c] sm:$0xf]
        %v327 = vld [vmem:[%s315 + $0x20] sm:$0xf]
        %v328 = vld [vmem:[%s315 + $0x24] sm:$0xf]
        %v329 = vld [vmem:[%s315 + $0x28] sm:$0xf]
        %v330 = vld [vmem:[%s315 + $0x2c] sm:$0xf]
        %v331 = vld [vmem:[%s315 + $0x30] sm:$0xf]
        %v332 = vld [vmem:[%s315 + $0x34] sm:$0xf]
        %v333 = vld [vmem:[%s315 + $0x38] sm:$0xf]
        %v334 = vld [vmem:[%s315 + $0x3c] sm:$0xf]
        %v335 = vld [vmem:[%s1] sm:$0xf]
        %v336 = vld [vmem:[%s1 + $0x4] sm:$0xf]
        %v337 = vld [vmem:[%s2] sm:$0x1]
        %v339 = vperm.slane %v337, 0
        %v357 = vunpack.c.l.b16 %v319
        %v358 = vunpack.c.l.b16 %v320
        %v359 = vunpack.c.l.b16 %v321
        %v360 = vunpack.c.l.b16 %v322
        %v361 = vunpack.c.l.b16 %v323
        %v362 = vunpack.c.l.b16 %v324
        %v363 = vunpack.c.l.b16 %v325
        %v364 = vunpack.c.l.b16 %v326
        %v365 = vunpack.c.l.b16 %v327
        %v366 = vunpack.c.l.b16 %v328
        %v367 = vunpack.c.l.b16 %v329
        %v368 = vunpack.c.l.b16 %v330
        %v369 = vunpack.c.l.b16 %v331
        %v370 = vunpack.c.l.b16 %v332
        %v371 = vunpack.c.l.b16 %v333
        %v372 = vunpack.c.l.b16 %v334
        %v373 = vpack.c.b16 %v358, %v357
        %v374 = vpack.c.b16 %v360, %v359
        %v375 = vpack.c.b16 %v362, %v361
        %v376 = vpack.c.b16 %v364, %v363
        %v377 = vpack.c.b16 %v366, %v365
        %v378 = vpack.c.b16 %v368, %v367
        %v379 = vpack.c.b16 %v370, %v369
        %v380 = vpack.c.b16 %v372, %v371
        %v383 = vunpack.c.l.b16 %v335
        %v384 = vunpack.c.l.b16 %v336
        %v385 = vpack.c.b16 %v384, %v383
        %vm387 = vcmask 130048
        %v389 = vsel %vm387, %v373, 0
        %v392 = vsel %vm387, %v374, 0
        %v395 = vsel %vm387, %v375, 0
        %v398 = vsel %vm387, %v376, 0
        %v401 = vsel %vm387, %v377, 0
        %v404 = vsel %vm387, %v378, 0
        %v407 = vsel %vm387, %v379, 0
        %v410 = vsel %vm387, %v380, 0
        %412 = vmatpush.bf16.msra.mxu0 0
        %413 = vmatpush.bf16.msra.mxu0 0
        %414 = vmatpush.bf16.msra.mxu0 0
        %415 = vmatpush.bf16.msra.mxu0 0
        %416 = vmatpush.bf16.msra.mxu0 0
        %417 = vmatpush.bf16.msra.mxu0 0
        %418 = vmatpush.bf16.msra.mxu0 0
        %419 = vmatpush.bf16.msra.mxu0 %v385
        %420 = vmatmul.bf16.gmra.mxu0 %v389
        %v421 = vpop.f32.mrf.mxu0
        %v422 = vadd.f32 %v339, %v421
        %v423 = vpop.f32.mrf.mxu0
        %v424 = vadd.f32 %v339, %v423
        %425 = vmatmul.bf16.gmra.mxu0 %v392
        %v426 = vpop.f32.mrf.mxu0
        %v427 = vadd.f32 %v339, %v426
        %v428 = vpop.f32.mrf.mxu0
        %v429 = vadd.f32 %v339, %v428
        %430 = vmatmul.bf16.gmra.mxu0 %v395
        %v431 = vpop.f32.mrf.mxu0
        %v432 = vadd.f32 %v339, %v431
        %v433 = vpop.f32.mrf.mxu0
        %v434 = vadd.f32 %v339, %v433
        %435 = vmatmul.bf16.gmra.mxu0 %v398
        %v436 = vpop.f32.mrf.mxu0
        %v437 = vadd.f32 %v339, %v436
        %v438 = vpop.f32.mrf.mxu0
        %v439 = vadd.f32 %v339, %v438
        %440 = vmatmul.bf16.gmra.mxu0 %v401
        %v441 = vpop.f32.mrf.mxu0
        %v442 = vadd.f32 %v339, %v441
        %v443 = vpop.f32.mrf.mxu0
        %v444 = vadd.f32 %v339, %v443
        %445 = vmatmul.bf16.gmra.mxu0 %v404
        %v446 = vpop.f32.mrf.mxu0
        %v447 = vadd.f32 %v339, %v446
        %v448 = vpop.f32.mrf.mxu0
        %v449 = vadd.f32 %v339, %v448
        %450 = vmatmul.bf16.gmra.mxu0 %v407
        %v451 = vpop.f32.mrf.mxu0
        %v452 = vadd.f32 %v339, %v451
        %v453 = vpop.f32.mrf.mxu0
        %v454 = vadd.f32 %v339, %v453
        %455 = vmatmul.bf16.gmra.mxu0 %v410
        %v456 = vpop.f32.mrf.mxu0
        %v457 = vadd.f32 %v339, %v456
        %v458 = vpop.f32.mrf.mxu0
        %v459 = vadd.f32 %v339, %v458
        %460 = vdwg.mxu0
        %v461 = vmax.f32 %v422, 0.0
        %v462 = vmax.f32 %v424, 0.0
        %v463 = vmax.f32 %v427, 0.0
        %v464 = vmax.f32 %v429, 0.0
        %v465 = vmax.f32 %v432, 0.0
        %v466 = vmax.f32 %v434, 0.0
        %v467 = vmax.f32 %v437, 0.0
        %v468 = vmax.f32 %v439, 0.0
        %v469 = vmax.f32 %v442, 0.0
        %v470 = vmax.f32 %v444, 0.0
        %v471 = vmax.f32 %v447, 0.0
        %v472 = vmax.f32 %v449, 0.0
        %v473 = vmax.f32 %v452, 0.0
        %v474 = vmax.f32 %v454, 0.0
        %v475 = vmax.f32 %v457, 0.0
        %v476 = vmax.f32 %v459, 0.0
        %v477 = vpack.c.bf16 %v462, %v461
        %v478 = vpack.c.bf16 %v464, %v463
        %v479 = vpack.c.bf16 %v466, %v465
        %v480 = vpack.c.bf16 %v468, %v467
        %v481 = vpack.c.bf16 %v470, %v469
        %v482 = vpack.c.bf16 %v472, %v471
        %v483 = vpack.c.bf16 %v474, %v473
        %v484 = vpack.c.bf16 %v476, %v475
        %v485 = vld [vmem:[%s3] sm:$0xf]
        %v486 = vld [vmem:[%s3 + $0x4] sm:$0xf]
        %v487 = vld [vmem:[%s3 + $0x8] sm:$0xf]
        %v488 = vld [vmem:[%s3 + $0xc] sm:$0xf]
        %v489 = vld [vmem:[%s4] sm:$0x1]
        %v491 = vperm.slane %v489, 0
        %v497 = vunpack.c.l.b16 %v485
        %v498 = vunpack.c.l.b16 %v486
        %v499 = vunpack.c.l.b16 %v487
        %v500 = vunpack.c.l.b16 %v488
        %v501 = vpack.c.b16 %v498, %v497
        %v502 = vpack.c.b16 %v500, %v499
        %vm505 = vcmask 261120
        %v507 = vsel %vm505, %v477, 0
        %v510 = vsel %vm505, %v478, 0
        %v513 = vsel %vm505, %v479, 0
        %v516 = vsel %vm505, %v480, 0
        %v519 = vsel %vm505, %v481, 0
        %v522 = vsel %vm505, %v482, 0
        %v525 = vsel %vm505, %v483, 0
        %v528 = vsel %vm505, %v484, 0
        %530 = vmatpush.bf16.msra.mxu0 0
        %531 = vmatpush.bf16.msra.mxu0 0
        %532 = vmatpush.bf16.msra.mxu0 0
        %533 = vmatpush.bf16.msra.mxu0 0
        %534 = vmatpush.bf16.msra.mxu0 0
        %535 = vmatpush.bf16.msra.mxu0 0
        %536 = vmatpush.bf16.msra.mxu0 %v502
        %537 = vmatpush.bf16.msra.mxu0 %v501
        %538 = vmatmul.bf16.gmra.mxu0 %v507
        %v539 = vpop.f32.mrf.mxu0
        %v540 = vadd.f32 %v491, %v539
        %v541 = vpop.f32.mrf.mxu0
        %v542 = vadd.f32 %v491, %v541
        %543 = vmatmul.bf16.gmra.mxu0 %v510
        %v544 = vpop.f32.mrf.mxu0
        %v545 = vadd.f32 %v491, %v544
        %v546 = vpop.f32.mrf.mxu0
        %v547 = vadd.f32 %v491, %v546
        %548 = vmatmul.bf16.gmra.mxu0 %v513
        %v549 = vpop.f32.mrf.mxu0
        %v550 = vadd.f32 %v491, %v549
        %v551 = vpop.f32.mrf.mxu0
        %v552 = vadd.f32 %v491, %v551
        %553 = vmatmul.bf16.gmra.mxu0 %v516
        %v554 = vpop.f32.mrf.mxu0
        %v555 = vadd.f32 %v491, %v554
        %v556 = vpop.f32.mrf.mxu0
        %v557 = vadd.f32 %v491, %v556
        %558 = vmatmul.bf16.gmra.mxu0 %v519
        %v559 = vpop.f32.mrf.mxu0
        %v560 = vadd.f32 %v491, %v559
        %v561 = vpop.f32.mrf.mxu0
        %v562 = vadd.f32 %v491, %v561
        %563 = vmatmul.bf16.gmra.mxu0 %v522
        %v564 = vpop.f32.mrf.mxu0
        %v565 = vadd.f32 %v491, %v564
        %v566 = vpop.f32.mrf.mxu0
        %v567 = vadd.f32 %v491, %v566
        %568 = vmatmul.bf16.gmra.mxu0 %v525
        %v569 = vpop.f32.mrf.mxu0
        %v570 = vadd.f32 %v491, %v569
        %v571 = vpop.f32.mrf.mxu0
        %v572 = vadd.f32 %v491, %v571
        %573 = vmatmul.bf16.gmra.mxu0 %v528
        %v574 = vpop.f32.mrf.mxu0
        %v575 = vadd.f32 %v491, %v574
        %v576 = vpop.f32.mrf.mxu0
        %v577 = vadd.f32 %v491, %v576
        %578 = vdwg.mxu0
        %v579 = vmax.f32 %v540, 0.0
        %v580 = vmax.f32 %v542, 0.0
        %v581 = vmax.f32 %v545, 0.0
        %v582 = vmax.f32 %v547, 0.0
        %v583 = vmax.f32 %v550, 0.0
        %v584 = vmax.f32 %v552, 0.0
        %v585 = vmax.f32 %v555, 0.0
        %v586 = vmax.f32 %v557, 0.0
        %v587 = vmax.f32 %v560, 0.0
        %v588 = vmax.f32 %v562, 0.0
        %v589 = vmax.f32 %v565, 0.0
        %v590 = vmax.f32 %v567, 0.0
        %v591 = vmax.f32 %v570, 0.0
        %v592 = vmax.f32 %v572, 0.0
        %v593 = vmax.f32 %v575, 0.0
        %v594 = vmax.f32 %v577, 0.0
        %v595 = vpack.c.bf16 %v580, %v579
        %v596 = vpack.c.bf16 %v582, %v581
        %v597 = vpack.c.bf16 %v584, %v583
        %v598 = vpack.c.bf16 %v586, %v585
        %v599 = vpack.c.bf16 %v588, %v587
        %v600 = vpack.c.bf16 %v590, %v589
        %v601 = vpack.c.bf16 %v592, %v591
        %v602 = vpack.c.bf16 %v594, %v593
        %v603 = vld [vmem:[%s5] sm:$0xf]
        %v604 = vld [vmem:[%s5 + $0x4] sm:$0xf]
        %v605 = vld [vmem:[%s6] sm:$0x1]
        %v607 = vperm.slane %v605, 0
        %v611 = vunpack.c.l.b16 %v603
        %v612 = vunpack.c.l.b16 %v604
        %v613 = vpack.c.b16 %v612, %v611
        %v616 = vsel %vm387, %v595, 0
        %v619 = vsel %vm387, %v596, 0
        %v622 = vsel %vm387, %v597, 0
        %v625 = vsel %vm387, %v598, 0
        %v628 = vsel %vm387, %v599, 0
        %v631 = vsel %vm387, %v600, 0
        %v634 = vsel %vm387, %v601, 0
        %v637 = vsel %vm387, %v602, 0
        %639 = vmatpush.bf16.msra.mxu0 0
        %640 = vmatpush.bf16.msra.mxu0 0
        %641 = vmatpush.bf16.msra.mxu0 0
        %642 = vmatpush.bf16.msra.mxu0 0
        %643 = vmatpush.bf16.msra.mxu0 0
        %644 = vmatpush.bf16.msra.mxu0 0
        %645 = vmatpush.bf16.msra.mxu0 0
        %646 = vmatpush.bf16.msra.mxu0 %v613
        %647 = vmatmul.bf16.gmra.mxu0 %v616
        %v648 = vpop.f32.mrf.mxu0
        %v649 = vadd.f32 %v607, %v648
        %v650 = vpop.f32.mrf.mxu0
        %v651 = vadd.f32 %v607, %v650
        %652 = vmatmul.bf16.gmra.mxu0 %v619
        %v653 = vpop.f32.mrf.mxu0
        %v654 = vadd.f32 %v607, %v653
        %v655 = vpop.f32.mrf.mxu0
        %v656 = vadd.f32 %v607, %v655
        %657 = vmatmul.bf16.gmra.mxu0 %v622
        %v658 = vpop.f32.mrf.mxu0
        %v659 = vadd.f32 %v607, %v658
        %v660 = vpop.f32.mrf.mxu0
        %v661 = vadd.f32 %v607, %v660
        %662 = vmatmul.bf16.gmra.mxu0 %v625
        %v663 = vpop.f32.mrf.mxu0
        %v664 = vadd.f32 %v607, %v663
        %v665 = vpop.f32.mrf.mxu0
        %v666 = vadd.f32 %v607, %v665
        %667 = vmatmul.bf16.gmra.mxu0 %v628
        %v668 = vpop.f32.mrf.mxu0
        %v669 = vadd.f32 %v607, %v668
        %v670 = vpop.f32.mrf.mxu0
        %v671 = vadd.f32 %v607, %v670
        %672 = vmatmul.bf16.gmra.mxu0 %v631
        %v673 = vpop.f32.mrf.mxu0
        %v674 = vadd.f32 %v607, %v673
        %v675 = vpop.f32.mrf.mxu0
        %v676 = vadd.f32 %v607, %v675
        %677 = vmatmul.bf16.gmra.mxu0 %v634
        %v678 = vpop.f32.mrf.mxu0
        %v679 = vadd.f32 %v607, %v678
        %v680 = vpop.f32.mrf.mxu0
        %v681 = vadd.f32 %v607, %v680
        %682 = vmatmul.bf16.gmra.mxu0 %v637
        %v683 = vpop.f32.mrf.mxu0
        %v684 = vadd.f32 %v607, %v683
        %v685 = vpop.f32.mrf.mxu0
        %v686 = vadd.f32 %v607, %v685
        %687 = vdwg.mxu0
        %689 = vset.pattern.permute.xlu0 0
        %690 = vperm.xlu0 %689, %v649
        %v691 = vpop.permute.xlu0 %690
        %694 = vset.pattern.permute.xlu0 0
        %695 = vperm.xlu0 %694, %v651
        %v696 = vpop.permute.xlu0 %695
        %699 = vset.pattern.permute.xlu0 0
        %700 = vperm.xlu0 %699, %v654
        %v701 = vpop.permute.xlu0 %700
        %704 = vset.pattern.permute.xlu0 0
        %705 = vperm.xlu0 %704, %v656
        %v706 = vpop.permute.xlu0 %705
        %709 = vset.pattern.permute.xlu0 0
        %710 = vperm.xlu0 %709, %v659
        %v711 = vpop.permute.xlu0 %710
        %714 = vset.pattern.permute.xlu0 0
        %715 = vperm.xlu0 %714, %v661
        %v716 = vpop.permute.xlu0 %715
        %719 = vset.pattern.permute.xlu0 0
        %720 = vperm.xlu0 %719, %v664
        %v721 = vpop.permute.xlu0 %720
        %724 = vset.pattern.permute.xlu0 0
        %725 = vperm.xlu0 %724, %v666
        %v726 = vpop.permute.xlu0 %725
        %729 = vset.pattern.permute.xlu0 0
        %730 = vperm.xlu0 %729, %v669
        %v731 = vpop.permute.xlu0 %730
        %734 = vset.pattern.permute.xlu0 0
        %735 = vperm.xlu0 %734, %v671
        %v736 = vpop.permute.xlu0 %735
        %739 = vset.pattern.permute.xlu0 0
        %740 = vperm.xlu0 %739, %v674
        %v741 = vpop.permute.xlu0 %740
        %744 = vset.pattern.permute.xlu0 0
        %745 = vperm.xlu0 %744, %v676
        %v746 = vpop.permute.xlu0 %745
        %749 = vset.pattern.permute.xlu0 0
        %750 = vperm.xlu0 %749, %v679
        %v751 = vpop.permute.xlu0 %750
        %754 = vset.pattern.permute.xlu0 0
        %755 = vperm.xlu0 %754, %v681
        %v756 = vpop.permute.xlu0 %755
        %759 = vset.pattern.permute.xlu0 0
        %760 = vperm.xlu0 %759, %v684
        %v761 = vpop.permute.xlu0 %760
        %764 = vset.pattern.permute.xlu0 0
        %765 = vperm.xlu0 %764, %v686
        %v766 = vpop.permute.xlu0 %765
        %v768 = vadd.f32 %v691, %v649
        %v769 = vadd.f32 %v696, %v651
        %v770 = vadd.f32 %v701, %v654
        %v771 = vadd.f32 %v706, %v656
        %v772 = vadd.f32 %v711, %v659
        %v773 = vadd.f32 %v716, %v661
        %v774 = vadd.f32 %v721, %v664
        %v775 = vadd.f32 %v726, %v666
        %v776 = vadd.f32 %v731, %v669
        %v777 = vadd.f32 %v736, %v671
        %v778 = vadd.f32 %v741, %v674
        %v779 = vadd.f32 %v746, %v676
        %v780 = vadd.f32 %v751, %v679
        %v781 = vadd.f32 %v756, %v681
        %v782 = vadd.f32 %v761, %v684
        %v783 = vadd.f32 %v766, %v686
        %v784 = vpack.c.bf16 %v768, %v768
        %v785 = vpack.c.bf16 %v769, %v769
        %v786 = vpack.c.bf16 %v770, %v770
        %v787 = vpack.c.bf16 %v771, %v771
        %v788 = vpack.c.bf16 %v772, %v772
        %v789 = vpack.c.bf16 %v773, %v773
        %v790 = vpack.c.bf16 %v774, %v774
        %v791 = vpack.c.bf16 %v775, %v775
        %v792 = vpack.c.bf16 %v776, %v776
        %v793 = vpack.c.bf16 %v777, %v777
        %v794 = vpack.c.bf16 %v778, %v778
        %v795 = vpack.c.bf16 %v779, %v779
        %v796 = vpack.c.bf16 %v780, %v780
        %v797 = vpack.c.bf16 %v781, %v781
        %v798 = vpack.c.bf16 %v782, %v782
        %v799 = vpack.c.bf16 %v783, %v783
        %800 = vst [vmem:[%s303] sm:$0xf] %v784
        %801 = vst [vmem:[%s303 + $0x4] sm:$0xf] %v785
        %802 = vst [vmem:[%s303 + $0x8] sm:$0xf] %v786
        %803 = vst [vmem:[%s303 + $0xc] sm:$0xf] %v787
        %804 = vst [vmem:[%s303 + $0x10] sm:$0xf] %v788
        %805 = vst [vmem:[%s303 + $0x14] sm:$0xf] %v789
        %806 = vst [vmem:[%s303 + $0x18] sm:$0xf] %v790
        %807 = vst [vmem:[%s303 + $0x1c] sm:$0xf] %v791
        %808 = vst [vmem:[%s303 + $0x20] sm:$0xf] %v792
        %809 = vst [vmem:[%s303 + $0x24] sm:$0xf] %v793
        %810 = vst [vmem:[%s303 + $0x28] sm:$0xf] %v794
        %811 = vst [vmem:[%s303 + $0x2c] sm:$0xf] %v795
        %812 = vst [vmem:[%s303 + $0x30] sm:$0xf] %v796
        %813 = vst [vmem:[%s303 + $0x34] sm:$0xf] %v797
        %814 = vst [vmem:[%s303 + $0x38] sm:$0xf] %v798
        %815 = vst [vmem:[%s303 + $0x3c] sm:$0xf] %v799
        %v816 = vlaneseq
        %v817 = vand.u32 %v816, 127
        %v818 = vlaneseq
        %v819 = vshrl.u32 %v818, 7
        %v820 = vadd.s32 %v819, 8
        %v821 = vadd.s32 %v819, 16
        %v822 = vadd.s32 %v819, 24
        %v823 = vadd.s32 %v819, 32
        %v824 = vadd.s32 %v819, 40
        %v825 = vadd.s32 %v819, 48
        %v826 = vadd.s32 %v819, 56
        %v827 = vadd.s32 %v819, 64
        %v828 = vadd.s32 %v819, 72
        %v829 = vadd.s32 %v819, 80
        %v830 = vadd.s32 %v819, 88
        %v831 = vadd.s32 %v819, 96
        %v832 = vadd.s32 %v819, 104
        %v833 = vadd.s32 %v819, 112
        %v834 = vadd.s32 %v819, 120
        %s835 = smul.u32 %s26, 128
        %v836 = vstv %s835
        %v837 = vadd.s32 %v819, %v836
        %v838 = vadd.s32 %v820, %v836
        %v839 = vadd.s32 %v821, %v836
        %v840 = vadd.s32 %v822, %v836
        %v841 = vadd.s32 %v823, %v836
        %v842 = vadd.s32 %v824, %v836
        %v843 = vadd.s32 %v825, %v836
        %v844 = vadd.s32 %v826, %v836
        %v845 = vadd.s32 %v827, %v836
        %v846 = vadd.s32 %v828, %v836
        %v847 = vadd.s32 %v829, %v836
        %v848 = vadd.s32 %v830, %v836
        %v849 = vadd.s32 %v831, %v836
        %v850 = vadd.s32 %v832, %v836
        %v851 = vadd.s32 %v833, %v836
        %v852 = vadd.s32 %v834, %v836
        %vm853 = vcmp.ge.s32.totalorder %v817, 1
        %vm854 = vcmp.lt.s32.totalorder %v837, 300
        %vm855 = vcmp.lt.s32.totalorder %v838, 300
        %vm856 = vcmp.lt.s32.totalorder %v839, 300
        %vm857 = vcmp.lt.s32.totalorder %v840, 300
        %vm858 = vcmp.lt.s32.totalorder %v841, 300
        %vm859 = vcmp.lt.s32.totalorder %v842, 300
        %vm860 = vcmp.lt.s32.totalorder %v843, 300
        %vm861 = vcmp.lt.s32.totalorder %v844, 300
        %vm862 = vcmp.lt.s32.totalorder %v845, 300
        %vm863 = vcmp.lt.s32.totalorder %v846, 300
        %vm864 = vcmp.lt.s32.totalorder %v847, 300
        %vm865 = vcmp.lt.s32.totalorder %v848, 300
        %vm866 = vcmp.lt.s32.totalorder %v849, 300
        %vm867 = vcmp.lt.s32.totalorder %v850, 300
        %vm868 = vcmp.lt.s32.totalorder %v851, 300
        %vm869 = vcmp.lt.s32.totalorder %v852, 300
        %vm870 = vmand %vm853, %vm854
        %vm871 = vmand %vm853, %vm855
        %vm872 = vmand %vm853, %vm856
        %vm873 = vmand %vm853, %vm857
        %vm874 = vmand %vm853, %vm858
        %vm875 = vmand %vm853, %vm859
        %vm876 = vmand %vm853, %vm860
        %vm877 = vmand %vm853, %vm861
        %vm878 = vmand %vm853, %vm862
        %vm879 = vmand %vm853, %vm863
        %vm880 = vmand %vm853, %vm864
        %vm881 = vmand %vm853, %vm865
        %vm882 = vmand %vm853, %vm866
        %vm883 = vmand %vm853, %vm867
        %vm884 = vmand %vm853, %vm868
        %vm885 = vmand %vm853, %vm869
        %v886 = vsel %vm870, %v649, 0.0
        %v887 = vsel %vm871, %v651, 0.0
        %v888 = vsel %vm872, %v654, 0.0
        %v889 = vsel %vm873, %v656, 0.0
        %v890 = vsel %vm874, %v659, 0.0
        %v891 = vsel %vm875, %v661, 0.0
        %v892 = vsel %vm876, %v664, 0.0
        %v893 = vsel %vm877, %v666, 0.0
        %v894 = vsel %vm878, %v669, 0.0
        %v895 = vsel %vm879, %v671, 0.0
        %v896 = vsel %vm880, %v674, 0.0
        %v897 = vsel %vm881, %v676, 0.0
        %v898 = vsel %vm882, %v679, 0.0
        %v899 = vsel %vm883, %v681, 0.0
        %v900 = vsel %vm884, %v684, 0.0
        %v901 = vsel %vm885, %v686, 0.0
        %v902 = vadd.f32 %v886, %v887
        %v903 = vadd.f32 %v902, %v888
        %v904 = vadd.f32 %v903, %v889
        %v905 = vadd.f32 %v904, %v890
        %v906 = vadd.f32 %v905, %v891
        %v907 = vadd.f32 %v906, %v892
        %v908 = vadd.f32 %v907, %v893
        %v909 = vadd.f32 %v908, %v894
        %v910 = vadd.f32 %v909, %v895
        %v911 = vadd.f32 %v910, %v896
        %v912 = vadd.f32 %v911, %v897
        %v913 = vadd.f32 %v912, %v898
        %v914 = vadd.f32 %v913, %v899
        %v915 = vadd.f32 %v914, %v900
        %v916 = vadd.f32 %v915, %v901
        %v917 = vrot.slane %v916, 4
        %v918 = vadd.f32 %v916, %v917
        %v919 = vrot.slane %v918, 2
        %v920 = vadd.f32 %v918, %v919
        %v921 = vrot.slane %v920, 1
        %v922 = vadd.f32 %v920, %v921
        %vm923 = vcmp.eq.s32.totalorder %v819, 0
        %v924 = vsel %vm923, %v922, 0.0
        %925 = vst [vmem:[%s310] sm:$0xff] %v924
        %s926 = sand.u32 %s186, 1
        %s927 = scalar_lea.sflag [#allocation3], %s926
        %s928 = sand.u32 %s186, 1
        %s929 = smul.addr %s928, 64
        %s930 = scalar_lea.vmem [#allocation2], %s929
        %s931 = sand.u32 %s212, 1
        %s932 = scalar_lea.sflag [#allocation5], %s931
        %s933 = sand.u32 %s212, 1
        %s934 = smul.addr %s933, 8
        %s935 = scalar_lea.vmem [#allocation4], %s934
        // Predicated region
        $region49: #{tpu_custom_call.1} parent=47 // pred_check
          %p936 = pneg %p196
        $region50: #{tpu_custom_call.1} parent=47 // pred_check_branch
          %938 = sbr.rel (%p936) target = $region52
        $region51: #{tpu_custom_call.1} parent=47 // pred_region
          %s939 = smul.u32 16, %s26
          %941 = vsyncadd %s927, 0
          %s942 = smul.addr %s939, 4
          %s943 = scalar_lea.hbm %s7, %s942
          %s944 = sshll.u32 %s930, 4
          %s945 = int_to_ptr.vmem [resolvable:$true] %s944
          %s946 = sshll.u32 %s943, 4
          %s947 = int_to_ptr.hbm [resolvable:$true] %s946
          %952 = dma.vmem_to_hbm [thread:$0]  %s945, 1024, %s947, %s927, 64, 64, 4
        $region52: #{tpu_custom_call.1} parent=47 // pred_fallthru
          _
        // Predicated region
        $region53: #{tpu_custom_call.1} parent=47 // pred_check
          %p953 = pneg %p222
        $region54: #{tpu_custom_call.1} parent=47 // pred_check_branch
          %955 = sbr.rel (%p953) target = $region56
        $region55: #{tpu_custom_call.1} parent=47 // pred_region
          %957 = vsyncadd %s932, 0
          %s958 = smul.addr %s26, 8
          %s959 = scalar_lea.hbm %s8, %s958
          %s961 = sshll.u32 %s935, 4
          %s962 = int_to_ptr.vmem [resolvable:$true] %s961
          %s963 = sshll.u32 %s959, 4
          %s964 = int_to_ptr.hbm [resolvable:$true] %s963
          %966 = dma.vmem_to_hbm [thread:$0]  %s962, 128, %s964, %s932
        $region56: #{tpu_custom_call.1} parent=47 // pred_fallthru
          _
      $region48: #{tpu_custom_call.1} parent=5 // pred_fallthru
        _
      %p967 = scmp.le.s32.totalorder 2, %s21
      // Predicated region
      $region57: #{tpu_custom_call.1} parent=5 // pred_check
        %p968 = pneg %p967
      $region58: #{tpu_custom_call.1} parent=5 // pred_check_branch
        %970 = sbr.rel (%p968) target = $region60
      $region59: #{tpu_custom_call.1} parent=5 // pred_region
        %s971 = ssub.s32 %s21, 2
        // Predicated region
        $region61: #{tpu_custom_call.1} parent=59 // pred_check
          %p972 = pneg %p202
        $region62: #{tpu_custom_call.1} parent=59 // pred_check_branch
          %974 = sbr.rel (%p972) target = $region64
        $region63: #{tpu_custom_call.1} parent=59 // pred_region
          %s975 = sand.u32 %s187, 1
          %s976 = scalar_lea.sflag [#allocation3], %s975
          %s977 = sand.u32 %s187, 1
          %s978 = smul.addr %s977, 64
          %s979 = scalar_lea.vmem [#allocation2], %s978
          %981 = dma.done %s976, 1024
        $region64: #{tpu_custom_call.1} parent=59 // pred_fallthru
          _
        // Predicated region
        $region65: #{tpu_custom_call.1} parent=59 // pred_check
          %p982 = pneg %p228
        $region66: #{tpu_custom_call.1} parent=59 // pred_check_branch
          %984 = sbr.rel (%p982) target = $region68
        $region67: #{tpu_custom_call.1} parent=59 // pred_region
          %s985 = sand.u32 %s213, 1
          %s986 = scalar_lea.sflag [#allocation5], %s985
          %s987 = sand.u32 %s213, 1
          %s988 = smul.addr %s987, 8
          %s989 = scalar_lea.vmem [#allocation4], %s988
          %991 = dma.done %s986, 128
        $region68: #{tpu_custom_call.1} parent=59 // pred_fallthru
          _
      $region60: #{tpu_custom_call.1} parent=5 // pred_fallthru
        _
    $region6: #{tpu_custom_call.1} parent=1 // loop_footer
      %s25 = sadd.s32 1, %s21
    $region7: #{tpu_custom_call.1} parent=1 // loop_footer_branch
      %20 = sbr.rel target = $region3
    $region8: #{tpu_custom_call.1} parent=1 // loop_exit
      _
    %992 = vsyncpa [#allocation3], 1
    %s993 = scalar_lea.sflag [#allocation3], 1
    %994 = vsyncpa %s993, 1
    %995 = vsyncpa [#allocation5], 1
    %s996 = scalar_lea.sflag [#allocation5], 1
    %997 = vsyncpa %s996, 1

</llo_original>
